<compile_context>
chip_gen: v5e
topology: v5e:2x2
jax: 0.10.0
libtpu: 0.0.40
codegen_flags: <defaults>
</compile_context>

<pallas_src>
import jax
import jax.numpy as jnp
from jax.experimental import pallas as pl
from jax.experimental.pallas import tpu as pltpu

LANE = 128  # TPU lane width (last dim of vregs / MXU tiles).


def _round_up(x, m):
    return ((x + m - 1) // m) * m


def _vmem_capacity_bytes():
    """Physical per-core VMEM; conservative 64 MiB (v7x) if the probe fails."""
    if hasattr(pltpu, "get_tpu_info"):
        try:  # pure host-side capability probe; OK to fall back silently.
            cap = getattr(pltpu.get_tpu_info(), "vmem_capacity_bytes", None)
            if cap:
                return int(cap)
        except Exception:
            pass
    return 64 * 1024 * 1024


# ----------------------------------------------------------------------------
# Kernel
# ----------------------------------------------------------------------------
def mlp3l_kernel(x_ref, w1_ref, b1_ref, w2_ref, b2_ref, w3_ref, b3_ref, o_ref):
    cd = w1_ref.dtype
    x = x_ref[...].astype(cd)  # cast in-kernel; no host-side pad/cast pass over x
    # Layer 1: Linear + ReLU (bf16 MXU matmul, f32 accumulate / bias / ReLU)
    h1 = jnp.dot(x, w1_ref[...], preferred_element_type=jnp.float32)
    h1 = jnp.maximum(h1 + b1_ref[...], 0.0)
    # Layer 2: Linear + ReLU
    h2 = jnp.dot(h1.astype(cd), w2_ref[...], preferred_element_type=jnp.float32)
    h2 = jnp.maximum(h2 + b2_ref[...], 0.0)
    # Layer 3: Linear (no activation)
    out = jnp.dot(h2.astype(cd), w3_ref[...], preferred_element_type=jnp.float32)
    o_ref[...] = (out + b3_ref[...]).astype(o_ref.dtype)


# ----------------------------------------------------------------------------
# One-time parameter preparation (pad hidden dims to lane width, cast to bf16)
# ----------------------------------------------------------------------------
def prepare_mlp3l_params(w1, b1, w2, b2, w3, b3, *, compute_dtype=jnp.bfloat16):
    """Call once at init time; the returned tuple is reused by every forward."""
    inp_dim, lat1 = w1.shape
    lat2, out_dim = w3.shape[0], w3.shape[1]
    lat1_p = _round_up(lat1, LANE)
    lat2_p = _round_up(lat2, LANE)
    # Only the hidden dims are padded (zero-padding preserves the math); the
    # input (K of layer 1) and output (N of layer 3) dims stay exact so x and
    # the output need no host-side padding or slicing.
    w1_p = jnp.pad(w1, ((0, 0), (0, lat1_p - lat1))).astype(compute_dtype)
    w2_p = jnp.pad(w2, ((0, lat1_p - lat1), (0, lat2_p - lat2))).astype(compute_dtype)
    w3_p = jnp.pad(w3, ((0, lat2_p - lat2), (0, 0))).astype(compute_dtype)
    b1_p = jnp.pad(b1, (0, lat1_p - lat1)).reshape(1, -1).astype(jnp.float32)
    b2_p = jnp.pad(b2, (0, lat2_p - lat2)).reshape(1, -1).astype(jnp.float32)
    b3_p = b3.reshape(1, -1).astype(jnp.float32)
    del inp_dim, out_dim
    return (w1_p, b1_p, w2_p, b2_p, w3_p, b3_p)


# ----------------------------------------------------------------------------
# Forward
# ----------------------------------------------------------------------------
def mlp3l_forward(x, params, *, tile_b=None, out_dtype=None):
    w1_p, b1_p, w2_p, b2_p, w3_p, b3_p = params
    B, inp_dim = x.shape
    assert w1_p.shape[0] == inp_dim, "x feature dim must match W1"
    lat1_p = w1_p.shape[1]
    lat2_p = w2_p.shape[1]
    out_dim = w3_p.shape[1]
    # out_dtype=jnp.bfloat16 halves output HBM traffic if the consumer allows it.
    out_dtype = x.dtype if out_dtype is None else out_dtype

    cd_bytes = jnp.dtype(w1_p.dtype).itemsize
    x_bytes = jnp.dtype(x.dtype).itemsize
    od_bytes = jnp.dtype(out_dtype).itemsize

    # ---- Generation-aware VMEM budget --------------------------------------
    cap = _vmem_capacity_bytes()                       # 128 MiB v5e/v6e, 64 MiB v7x
    budget = min(cap - (8 << 20), (7 * cap) // 8)      # ~112 MiB / ~56 MiB

    weight_elems = inp_dim * lat1_p + lat1_p * lat2_p + lat2_p * out_dim
    bias_elems = lat1_p + lat2_p + out_dim
    # Budget conservatively for DOUBLE-buffered weights so neither the
    # no-pipeline_mode fallback nor a jax that ignores Buffered(1) can OOM.
    weights_bytes = 2 * (weight_elems * cd_bytes + bias_elems * 4)

    # Bytes per batch row that scale with tile_b: double-buffered x/out tiles
    # plus the f32 (and bf16-cast) h1/h2 intermediates.
    per_row_bytes = (2 * inp_dim * x_bytes + 2 * out_dim * od_bytes
                     + (lat1_p + lat2_p) * (4 + cd_bytes))

    avail = budget - weights_bytes
    if avail < 128 * per_row_bytes:
        # TODO(synk): K/N-split grid with VMEM f32 accumulator for weights that
        # exceed the per-core VMEM budget (hits v7x first at ~half v5e/v6e size).
        raise ValueError(
            f"MLP_3L resident weights ({weights_bytes / 2**20:.1f} MiB, double-"
            f"buffered) exceed the {budget / 2**20:.0f} MiB VMEM budget; "
            "K/N-split path not implemented.")
    max_tile_b = max(128, (avail // per_row_bytes) // 128 * 128)

    # ---- tile_b: >=2 grid steps for v7x's 2 TCs, large tiles for v6e/v5e BW --
    if tile_b is None:
        if B <= 128:
            tile_b = 128
        else:
            target = min(1024, _round_up(pl.cdiv(B, 2), 128))
            tile_b = max(128, min(target, max_tile_b))
    assert tile_b % 128 == 0 and tile_b > 0, "tile_b must be a multiple of 128"

    grid = (pl.cdiv(B, tile_b),)  # partial last tile handled by Pallas masking

    vmem_need = weights_bytes + tile_b * per_row_bytes
    vmem_limit = int(min(budget, max(32 << 20, 2 * vmem_need)))

    flops = 2 * B * (inp_dim * lat1_p + lat1_p * lat2_p + lat2_p * out_dim)
    bytes_accessed = (B * inp_dim * x_bytes + weight_elems * cd_bytes
                      + bias_elems * 4 + B * out_dim * od_bytes)

    def _call(single_buffer_weights):
        def const_spec(shape):
            # Same block every grid step; a second pipeline buffer is VMEM waste.
            if single_buffer_weights:
                return pl.BlockSpec(shape, lambda i: (0, 0),
                                    pipeline_mode=pl.Buffered(1))
            return pl.BlockSpec(shape, lambda i: (0, 0))

        return pl.pallas_call(
            mlp3l_kernel,
            out_shape=jax.ShapeDtypeStruct((B, out_dim), out_dtype),
            grid_spec=pltpu.PrefetchScalarGridSpec(
                num_scalar_prefetch=0,
                grid=grid,
                in_specs=[
                    pl.BlockSpec((tile_b, inp_dim), lambda i: (i, 0)),  # x tile
                    const_spec((inp_dim, lat1_p)),                      # W1
                    const_spec((1, lat1_p)),                            # b1
                    const_spec((lat1_p, lat2_p)),                       # W2
                    const_spec((1, lat2_p)),                            # b2
                    const_spec((lat2_p, out_dim)),                      # W3
                    const_spec((1, out_dim)),                           # b3
                ],
                out_specs=pl.BlockSpec((tile_b, out_dim), lambda i: (i, 0)),
            ),
            compiler_params=pltpu.CompilerParams(
                dimension_semantics=("parallel",),
                vmem_limit_bytes=vmem_limit,
            ),
            cost_estimate=pl.CostEstimate(
                flops=flops, transcendentals=0, bytes_accessed=bytes_accessed),
        )(x, w1_p, b1_p, w2_p, b2_p, w3_p, b3_p)

    if hasattr(pl, "Buffered"):
        try:
            return _call(single_buffer_weights=True)
        except (NotImplementedError, TypeError, ValueError):
            # pipeline_mode=Buffered(1) unsupported by this jax/Mosaic build.
            # Fall back to default double-buffered weight specs -- already
            # accounted for in the VMEM budget, so this never uses more VMEM
            # than planned. Real failures (e.g. VMEM OOM -> XlaRuntimeError)
            # are NOT caught here and surface directly.
            pass
    return _call(single_buffer_weights=False)


# ----------------------------------------------------------------------------
# Utilities / self-test
# ----------------------------------------------------------------------------
def init_linear_params(key, fan_in, fan_out, dtype=jnp.float32):
    # PyTorch nn.Linear default init: U(-1/sqrt(fan_in), 1/sqrt(fan_in)).
    kw, kb = jax.random.split(key)
    bound = 1.0 / (fan_in ** 0.5)
    # Stored transposed relative to PyTorch -> kernel computes x @ W.
    w = jax.random.uniform(kw, (fan_in, fan_out), dtype, minval=-bound, maxval=bound)
    b = jax.random.uniform(kb, (fan_out,), dtype, minval=-bound, maxval=bound)
    return w, b


def _ref_bf16(x, w1, b1, w2, b2, w3, b3):
    cd = jnp.bfloat16
    h = jnp.dot(x.astype(cd), w1.astype(cd), preferred_element_type=jnp.float32)
    h = jnp.maximum(h + b1, 0.0)
    h = jnp.dot(h.astype(cd), w2.astype(cd), preferred_element_type=jnp.float32)
    h = jnp.maximum(h + b2, 0.0)
    h = jnp.dot(h.astype(cd), w3.astype(cd), preferred_element_type=jnp.float32)
    return h + b3


def _ref_f32(x, w1, b1, w2, b2, w3, b3):
    h = jnp.maximum(x @ w1 + b1, 0.0)
    h = jnp.maximum(h @ w2 + b2, 0.0)
    return h @ w3 + b3


if __name__ == "__main__":
    # Small shapes consistent with MLP_3L(inp_dim, lat_dim_1, lat_dim_2, out_dim).
    B, inp_dim, lat1, lat2, out_dim = 8, 32, 64, 64, 16

    key = jax.random.PRNGKey(0)
    kx, k1, k2, k3, kx2 = jax.random.split(key, 5)

    x = jax.random.normal(kx, (B, inp_dim), jnp.float32)
    w1, b1 = init_linear_params(k1, inp_dim, lat1)
    w2, b2 = init_linear_params(k2, lat1, lat2)
    w3, b3 = init_linear_params(k3, lat2, out_dim)

    params = prepare_mlp3l_params(w1, b1, w2, b2, w3, b3)  # one-time pad/cast

    out = mlp3l_forward(x, params)
    out = jax.block_until_ready(out)
    assert out.shape == (B, out_dim)

    # Reference 1: same math (bf16 matmul operands / f32 accumulation).
    ref_bf = _ref_bf16(x, w1, b1, w2, b2, w3, b3)
    # Reference 2: pure f32 (same math as the PyTorch module), looser tolerance.
    ref_f32 = _ref_f32(x, w1, b1, w2, b2, w3, b3)
    assert jnp.allclose(out, ref_bf, atol=2e-2, rtol=2e-2)
    assert jnp.allclose(out, ref_f32, atol=6e-2, rtol=6e-2)

    # Second check: multi-step grid with a partial last batch tile (no padding).
    B2 = 300
    x2 = jax.random.normal(kx2, (B2, inp_dim), jnp.float32)
    out2 = jax.block_until_ready(mlp3l_forward(x2, params))
    assert out2.shape == (B2, out_dim)
    assert jnp.allclose(out2, _ref_bf16(x2, w1, b1, w2, b2, w3, b3),
                        atol=2e-2, rtol=2e-2)

    print("KERNEL_OK")
</pallas_src>

<mosaic_0001>
module attributes {stable_mosaic.version = 11 : i64} {
  func.func @mlp3l_kernel(%arg0: i32, %arg1: memref<128x32xf32, #tpu.memory_space<vmem>>, %arg2: memref<32x128xbf16, #tpu.memory_space<vmem>>, %arg3: memref<1x128xf32, #tpu.memory_space<vmem>>, %arg4: memref<128x128xbf16, #tpu.memory_space<vmem>>, %arg5: memref<1x128xf32, #tpu.memory_space<vmem>>, %arg6: memref<128x16xbf16, #tpu.memory_space<vmem>>, %arg7: memref<1x16xf32, #tpu.memory_space<vmem>>, %arg8: memref<128x16xf32, #tpu.memory_space<vmem>>) attributes {dimension_semantics = [#tpu.dimension_semantics<parallel>], iteration_bounds = array<i64: 1>, scalar_prefetch = 0 : i64, scratch_operands = 0 : i64, tpu.core_type = #tpu.core_type<tc>, window_params = [{transform_indices = @transform_0, window_bounds = array<i64: 128, 32>}, {pipeline_mode = #tpu.pipeline_mode<synchronous>, transform_indices = @transform_1, window_bounds = array<i64: 32, 128>}, {pipeline_mode = #tpu.pipeline_mode<synchronous>, transform_indices = @transform_2, window_bounds = array<i64: 1, 128>}, {pipeline_mode = #tpu.pipeline_mode<synchronous>, transform_indices = @transform_3, window_bounds = array<i64: 128, 128>}, {pipeline_mode = #tpu.pipeline_mode<synchronous>, transform_indices = @transform_4, window_bounds = array<i64: 1, 128>}, {pipeline_mode = #tpu.pipeline_mode<synchronous>, transform_indices = @transform_5, window_bounds = array<i64: 128, 16>}, {pipeline_mode = #tpu.pipeline_mode<synchronous>, transform_indices = @transform_6, window_bounds = array<i64: 1, 16>}, {transform_indices = @transform_7, window_bounds = array<i64: 128, 16>}]} {
    %c0 = arith.constant 0 : index
    %c0_0 = arith.constant 0 : index
    %0 = vector.load %arg1[%c0, %c0_0] : memref<128x32xf32, #tpu.memory_space<vmem>>, vector<128x32xf32>
    %1 = arith.truncf %0 : vector<128x32xf32> to vector<128x32xbf16>
    %c0_1 = arith.constant 0 : index
    %c0_2 = arith.constant 0 : index
    %2 = vector.load %arg2[%c0_1, %c0_2] : memref<32x128xbf16, #tpu.memory_space<vmem>>, vector<32x128xbf16>
    %cst = arith.constant dense<0.000000e+00> : vector<128x128xf32>
    %3 = tpu.matmul %1, %2, %cst {dimension_numbers = #tpu.dot_dimension_numbers<[1], [0], [0], [1], [0, 0, 1, 1], [], []>} : vector<128x32xbf16>, vector<32x128xbf16>, vector<128x128xf32> -> vector<128x128xf32>
    %c0_3 = arith.constant 0 : index
    %c0_4 = arith.constant 0 : index
    %4 = vector.load %arg3[%c0_3, %c0_4] : memref<1x128xf32, #tpu.memory_space<vmem>>, vector<1x128xf32>
    %5 = vector.broadcast %4 : vector<1x128xf32> to vector<128x128xf32>
    %6 = arith.addf %3, %5 : vector<128x128xf32>
    %cst_5 = arith.constant 0.000000e+00 : f32
    %7 = vector.broadcast %cst_5 : f32 to vector<128x128xf32>
    %8 = arith.maximumf %6, %7 : vector<128x128xf32>
    %9 = arith.truncf %8 : vector<128x128xf32> to vector<128x128xbf16>
    %c0_6 = arith.constant 0 : index
    %c0_7 = arith.constant 0 : index
    %10 = vector.load %arg4[%c0_6, %c0_7] : memref<128x128xbf16, #tpu.memory_space<vmem>>, vector<128x128xbf16>
    %cst_8 = arith.constant dense<0.000000e+00> : vector<128x128xf32>
    %11 = tpu.matmul %9, %10, %cst_8 {dimension_numbers = #tpu.dot_dimension_numbers<[1], [0], [0], [1], [0, 0, 1, 1], [], []>} : vector<128x128xbf16>, vector<128x128xbf16>, vector<128x128xf32> -> vector<128x128xf32>
    %c0_9 = arith.constant 0 : index
    %c0_10 = arith.constant 0 : index
    %12 = vector.load %arg5[%c0_9, %c0_10] : memref<1x128xf32, #tpu.memory_space<vmem>>, vector<1x128xf32>
    %13 = vector.broadcast %12 : vector<1x128xf32> to vector<128x128xf32>
    %14 = arith.addf %11, %13 : vector<128x128xf32>
    %cst_11 = arith.constant 0.000000e+00 : f32
    %15 = vector.broadcast %cst_11 : f32 to vector<128x128xf32>
    %16 = arith.maximumf %14, %15 : vector<128x128xf32>
    %17 = arith.truncf %16 : vector<128x128xf32> to vector<128x128xbf16>
    %c0_12 = arith.constant 0 : index
    %c0_13 = arith.constant 0 : index
    %18 = vector.load %arg6[%c0_12, %c0_13] : memref<128x16xbf16, #tpu.memory_space<vmem>>, vector<128x16xbf16>
    %cst_14 = arith.constant dense<0.000000e+00> : vector<128x16xf32>
    %19 = tpu.matmul %17, %18, %cst_14 {dimension_numbers = #tpu.dot_dimension_numbers<[1], [0], [0], [1], [0, 0, 1, 1], [], []>} : vector<128x128xbf16>, vector<128x16xbf16>, vector<128x16xf32> -> vector<128x16xf32>
    %c0_15 = arith.constant 0 : index
    %c0_16 = arith.constant 0 : index
    %20 = vector.load %arg7[%c0_15, %c0_16] : memref<1x16xf32, #tpu.memory_space<vmem>>, vector<1x16xf32>
    %21 = vector.broadcast %20 : vector<1x16xf32> to vector<128x16xf32>
    %22 = arith.addf %19, %21 : vector<128x16xf32>
    %c0_17 = arith.constant 0 : index
    %c0_18 = arith.constant 0 : index
    %23 = vector.load %arg8[%c0_17, %c0_18] : memref<128x16xf32, #tpu.memory_space<vmem>>, vector<128x16xf32>
    tpu.vector_store %arg8[%c0_17, %c0_18], %22 {strides = array<i32>} : memref<128x16xf32, #tpu.memory_space<vmem>>, vector<128x16xf32>,
    return
  }
  func.func @transform_0(%arg0: i32) -> (i32, i32) {
    %c0_i32 = arith.constant 0 : i32
    %c0_i32_0 = arith.constant 0 : i32
    return %arg0, %c0_i32 : i32, i32
  }
  func.func @transform_1(%arg0: i32) -> (i32, i32) {
    %c0_i32 = arith.constant 0 : i32
    %c0_i32_0 = arith.constant 0 : i32
    %c0_i32_1 = arith.constant 0 : i32
    return %c0_i32, %c0_i32_0 : i32, i32
  }
  func.func @transform_2(%arg0: i32) -> (i32, i32) {
    %c0_i32 = arith.constant 0 : i32
    %c0_i32_0 = arith.constant 0 : i32
    %c0_i32_1 = arith.constant 0 : i32
    return %c0_i32, %c0_i32_0 : i32, i32
  }
  func.func @transform_3(%arg0: i32) -> (i32, i32) {
    %c0_i32 = arith.constant 0 : i32
    %c0_i32_0 = arith.constant 0 : i32
    %c0_i32_1 = arith.constant 0 : i32
    return %c0_i32, %c0_i32_0 : i32, i32
  }
  func.func @transform_4(%arg0: i32) -> (i32, i32) {
    %c0_i32 = arith.constant 0 : i32
    %c0_i32_0 = arith.constant 0 : i32
    %c0_i32_1 = arith.constant 0 : i32
    return %c0_i32, %c0_i32_0 : i32, i32
  }
  func.func @transform_5(%arg0: i32) -> (i32, i32) {
    %c0_i32 = arith.constant 0 : i32
    %c0_i32_0 = arith.constant 0 : i32
    %c0_i32_1 = arith.constant 0 : i32
    return %c0_i32, %c0_i32_0 : i32, i32
  }
  func.func @transform_6(%arg0: i32) -> (i32, i32) {
    %c0_i32 = arith.constant 0 : i32
    %c0_i32_0 = arith.constant 0 : i32
    %c0_i32_1 = arith.constant 0 : i32
    return %c0_i32, %c0_i32_0 : i32, i32
  }
  func.func @transform_7(%arg0: i32) -> (i32, i32) {
    %c0_i32 = arith.constant 0 : i32
    %c0_i32_0 = arith.constant 0 : i32
    return %arg0, %c0_i32 : i32, i32
  }
}

</mosaic_0001>

<llo_original>
// kernel: tpu_custom_call.1
$region0: #{tpu_custom_call.1}
  #allocation0 [shape = 'u32[]', space=smem, size = 0x4, offset = 0x4, fixed_abs, tag = 'smem constant byte address 0x4 - core index']
  #allocation1 [shape = 'u32[72,128]{1,0:T(1,128)}', space=vmem, size = 0x9000, scoped, tag = 'internal scratch']
  %s0 = inlined_call_operand.vmem [shape: f32[8,32], index: 0, kind: input, shape index: {}]
  %s1 = inlined_call_operand.hbm [shape: bf16[32,128], index: 1, kind: input, shape index: {}]
  %s2 = inlined_call_operand.vmem [shape: f32[1,128], index: 2, kind: input, shape index: {}]
  %s3 = inlined_call_operand.vmem [shape: bf16[128,128], index: 3, kind: input, shape index: {}]
  %s4 = inlined_call_operand.vmem [shape: f32[1,128], index: 4, kind: input, shape index: {}]
  %s5 = inlined_call_operand.vmem [shape: bf16[128,16], index: 5, kind: input, shape index: {}]
  %s6 = inlined_call_operand.vmem [shape: f32[1,16], index: 6, kind: input, shape index: {}]
  %s7 = inlined_call_operand.hbm [shape: f32[8,16], index: 7, kind: output, shape index: {}]
  %s8 = sld [smem:[#allocation0]]
  $region42: #{tpu_custom_call.1} parent=0
    _
  %s10 = ssub.s32 1, %s8
  %s11 = scalar_select 0, %s10, %s8
  $region1: #{tpu_custom_call.1} parent=0
    #allocation2 [shape = 'u8[8192]{0}', space=vmem, size = 0x2000, scoped, tag = 'input window, operand 1, single buffered']
    #allocation3 [shape = 's32[1]{0}', space=sflag, size = 0x4, scoped, tag = 'scoped memory for tpu_custom_call.1']
    #allocation4 [shape = 's32[1]{0}', space=sflag, size = 0x4, scoped, tag = 'scoped memory for tpu_custom_call.1']
    #allocation5 [shape = 'u8[65536]{0}', space=vmem, size = 0x10000, scoped, tag = 'output window, operand 0, single buffered']
    %12 = vsyncpa [#allocation3], 0
    %13 = vsyncpa [#allocation4], 0
    // Predicated region
    $region2: #{tpu_custom_call.1} parent=1 // pred_check
      _
    $region3: #{tpu_custom_call.1} parent=1 // pred_check_branch
      %15 = sbr.rel (0) target = $region5
    $region4: #{tpu_custom_call.1} parent=1 // pred_region
      _
    $region5: #{tpu_custom_call.1} parent=1 // pred_fallthru
      _
    // Predicated region
    $region6: #{tpu_custom_call.1} parent=1 // pred_check
      _
    $region7: #{tpu_custom_call.1} parent=1 // pred_check_branch
      %17 = sbr.rel (0) target = $region9
    $region8: #{tpu_custom_call.1} parent=1 // pred_region
      %19 = vsyncadd [#allocation3], 0
      %s20 = sshll.u32 %s1, 4
      %s21 = int_to_ptr.hbm [resolvable:$true] %s20
      %s22 = sshll.u32 [#allocation2], 4
      %s23 = int_to_ptr.vmem [resolvable:$true] %s22
      %28 = dma.hbm_to_vmem [thread:$0]  %s21, 256, %s23, [#allocation3], 64, 64, 4
    $region9: #{tpu_custom_call.1} parent=1 // pred_fallthru
      _
    // Predicated region
    $region10: #{tpu_custom_call.1} parent=1 // pred_check
      _
    $region11: #{tpu_custom_call.1} parent=1 // pred_check_branch
      %30 = sbr.rel (0) target = $region13
    $region12: #{tpu_custom_call.1} parent=1 // pred_region
      _
    $region13: #{tpu_custom_call.1} parent=1 // pred_fallthru
      _
    // Predicated region
    $region14: #{tpu_custom_call.1} parent=1 // pred_check
      _
    $region15: #{tpu_custom_call.1} parent=1 // pred_check_branch
      %32 = sbr.rel (0) target = $region17
    $region16: #{tpu_custom_call.1} parent=1 // pred_region
      _
    $region17: #{tpu_custom_call.1} parent=1 // pred_fallthru
      _
    // Predicated region
    $region18: #{tpu_custom_call.1} parent=1 // pred_check
      _
    $region19: #{tpu_custom_call.1} parent=1 // pred_check_branch
      %34 = sbr.rel (0) target = $region21
    $region20: #{tpu_custom_call.1} parent=1 // pred_region
      _
    $region21: #{tpu_custom_call.1} parent=1 // pred_fallthru
      _
    // Predicated region
    $region22: #{tpu_custom_call.1} parent=1 // pred_check
      _
    $region23: #{tpu_custom_call.1} parent=1 // pred_check_branch
      %36 = sbr.rel (0) target = $region25
    $region24: #{tpu_custom_call.1} parent=1 // pred_region
      _
    $region25: #{tpu_custom_call.1} parent=1 // pred_fallthru
      _
    // Predicated region
    $region26: #{tpu_custom_call.1} parent=1 // pred_check
      _
    $region27: #{tpu_custom_call.1} parent=1 // pred_check_branch
      %38 = sbr.rel (0) target = $region29
    $region28: #{tpu_custom_call.1} parent=1 // pred_region
      _
    $region29: #{tpu_custom_call.1} parent=1 // pred_fallthru
      _
    // Predicated region
    $region30: #{tpu_custom_call.1} parent=1 // pred_check
      _
    $region31: #{tpu_custom_call.1} parent=1 // pred_check_branch
      %40 = sbr.rel (0) target = $region33
    $region32: #{tpu_custom_call.1} parent=1 // pred_region
      %42 = dma.done [#allocation3], 256
    $region33: #{tpu_custom_call.1} parent=1 // pred_fallthru
      _
    %v44 = vld [vmem:[%s0] sm:$0xff]
    %v45 = vld [vmem:[%s0 + $0x8] sm:$0xff]
    %v46 = vld [vmem:[%s0 + $0x10] sm:$0xff]
    %v47 = vld [vmem:[%s0 + $0x18] sm:$0xff]
    %v48 = vld [vmem:[%s0 + $0x20] sm:$0xff]
    %v49 = vld [vmem:[%s0 + $0x28] sm:$0xff]
    %v50 = vld [vmem:[%s0 + $0x30] sm:$0xff]
    %v51 = vld [vmem:[%s0 + $0x38] sm:$0xff]
    %v52 = vld [vmem:[%s0 + $0x40] sm:$0xff]
    %v53 = vld [vmem:[%s0 + $0x48] sm:$0xff]
    %v54 = vld [vmem:[%s0 + $0x50] sm:$0xff]
    %v55 = vld [vmem:[%s0 + $0x58] sm:$0xff]
    %v56 = vld [vmem:[%s0 + $0x60] sm:$0xff]
    %v57 = vld [vmem:[%s0 + $0x68] sm:$0xff]
    %v58 = vld [vmem:[%s0 + $0x70] sm:$0xff]
    %v59 = vld [vmem:[%s0 + $0x78] sm:$0xff]
    %v60 = vpack.c.bf16 %v45, %v44
    %v61 = vpack.c.bf16 %v47, %v46
    %v62 = vpack.c.bf16 %v49, %v48
    %v63 = vpack.c.bf16 %v51, %v50
    %v64 = vpack.c.bf16 %v53, %v52
    %v65 = vpack.c.bf16 %v55, %v54
    %v66 = vpack.c.bf16 %v57, %v56
    %v67 = vpack.c.bf16 %v59, %v58
    %v68 = vld [vmem:[#allocation2] sm:$0xf]
    %v69 = vld [vmem:[#allocation2 + $0x4] sm:$0xf]
    %v70 = vld [vmem:[#allocation2 + $0x8] sm:$0xf]
    %v71 = vld [vmem:[#allocation2 + $0xc] sm:$0xf]
    %v72 = vld [vmem:[%s2] sm:$0x1]
    %v74 = vperm.slane %v72, 0
    %v80 = vunpack.c.l.b16 %v68
    %v81 = vunpack.c.l.b16 %v69
    %v82 = vunpack.c.l.b16 %v70
    %v83 = vunpack.c.l.b16 %v71
    %v84 = vpack.c.b16 %v81, %v80
    %v85 = vpack.c.b16 %v83, %v82
    %vm88 = vcmask 261120
    %v90 = vsel %vm88, %v60, 0
    %v93 = vsel %vm88, %v61, 0
    %v96 = vsel %vm88, %v62, 0
    %v99 = vsel %vm88, %v63, 0
    %v102 = vsel %vm88, %v64, 0
    %v105 = vsel %vm88, %v65, 0
    %v108 = vsel %vm88, %v66, 0
    %v111 = vsel %vm88, %v67, 0
    %113 = vmatpush.bf16.msra.mxu0 0
    %114 = vmatpush.bf16.msra.mxu0 0
    %115 = vmatpush.bf16.msra.mxu0 0
    %116 = vmatpush.bf16.msra.mxu0 0
    %117 = vmatpush.bf16.msra.mxu0 0
    %118 = vmatpush.bf16.msra.mxu0 0
    %119 = vmatpush.bf16.msra.mxu0 %v85
    %120 = vmatpush.bf16.msra.mxu0 %v84
    %121 = vmatmul.bf16.gmra.mxu0 %v90
    %v122 = vpop.f32.mrf.mxu0
    %v123 = vadd.f32 %v74, %v122
    %v124 = vpop.f32.mrf.mxu0
    %v125 = vadd.f32 %v74, %v124
    %126 = vmatmul.bf16.gmra.mxu0 %v93
    %v127 = vpop.f32.mrf.mxu0
    %v128 = vadd.f32 %v74, %v127
    %v129 = vpop.f32.mrf.mxu0
    %v130 = vadd.f32 %v74, %v129
    %131 = vmatmul.bf16.gmra.mxu0 %v96
    %v132 = vpop.f32.mrf.mxu0
    %v133 = vadd.f32 %v74, %v132
    %v134 = vpop.f32.mrf.mxu0
    %v135 = vadd.f32 %v74, %v134
    %136 = vmatmul.bf16.gmra.mxu0 %v99
    %v137 = vpop.f32.mrf.mxu0
    %v138 = vadd.f32 %v74, %v137
    %v139 = vpop.f32.mrf.mxu0
    %v140 = vadd.f32 %v74, %v139
    %141 = vmatmul.bf16.gmra.mxu0 %v102
    %v142 = vpop.f32.mrf.mxu0
    %v143 = vadd.f32 %v74, %v142
    %v144 = vpop.f32.mrf.mxu0
    %v145 = vadd.f32 %v74, %v144
    %146 = vmatmul.bf16.gmra.mxu0 %v105
    %v147 = vpop.f32.mrf.mxu0
    %v148 = vadd.f32 %v74, %v147
    %v149 = vpop.f32.mrf.mxu0
    %v150 = vadd.f32 %v74, %v149
    %151 = vmatmul.bf16.gmra.mxu0 %v108
    %v152 = vpop.f32.mrf.mxu0
    %v153 = vadd.f32 %v74, %v152
    %v154 = vpop.f32.mrf.mxu0
    %v155 = vadd.f32 %v74, %v154
    %156 = vmatmul.bf16.gmra.mxu0 %v111
    %v157 = vpop.f32.mrf.mxu0
    %v158 = vadd.f32 %v74, %v157
    %v159 = vpop.f32.mrf.mxu0
    %v160 = vadd.f32 %v74, %v159
    %161 = vdwg.mxu0
    %v162 = vmax.f32 %v123, 0.0
    %v163 = vmax.f32 %v125, 0.0
    %v164 = vmax.f32 %v128, 0.0
    %v165 = vmax.f32 %v130, 0.0
    %v166 = vmax.f32 %v133, 0.0
    %v167 = vmax.f32 %v135, 0.0
    %v168 = vmax.f32 %v138, 0.0
    %v169 = vmax.f32 %v140, 0.0
    %v170 = vmax.f32 %v143, 0.0
    %v171 = vmax.f32 %v145, 0.0
    %v172 = vmax.f32 %v148, 0.0
    %v173 = vmax.f32 %v150, 0.0
    %v174 = vmax.f32 %v153, 0.0
    %v175 = vmax.f32 %v155, 0.0
    %v176 = vmax.f32 %v158, 0.0
    %v177 = vmax.f32 %v160, 0.0
    %v178 = vpack.c.bf16 %v163, %v162
    %v179 = vpack.c.bf16 %v165, %v164
    %v180 = vpack.c.bf16 %v167, %v166
    %v181 = vpack.c.bf16 %v169, %v168
    %v182 = vpack.c.bf16 %v171, %v170
    %v183 = vpack.c.bf16 %v173, %v172
    %v184 = vpack.c.bf16 %v175, %v174
    %v185 = vpack.c.bf16 %v177, %v176
    %v186 = vld [vmem:[%s3] sm:$0xf]
    %v187 = vld [vmem:[%s3 + $0x4] sm:$0xf]
    %v188 = vld [vmem:[%s3 + $0x8] sm:$0xf]
    %v189 = vld [vmem:[%s3 + $0xc] sm:$0xf]
    %v190 = vld [vmem:[%s3 + $0x10] sm:$0xf]
    %v191 = vld [vmem:[%s3 + $0x14] sm:$0xf]
    %v192 = vld [vmem:[%s3 + $0x18] sm:$0xf]
    %v193 = vld [vmem:[%s3 + $0x1c] sm:$0xf]
    %v194 = vld [vmem:[%s3 + $0x20] sm:$0xf]
    %v195 = vld [vmem:[%s3 + $0x24] sm:$0xf]
    %v196 = vld [vmem:[%s3 + $0x28] sm:$0xf]
    %v197 = vld [vmem:[%s3 + $0x2c] sm:$0xf]
    %v198 = vld [vmem:[%s3 + $0x30] sm:$0xf]
    %v199 = vld [vmem:[%s3 + $0x34] sm:$0xf]
    %v200 = vld [vmem:[%s3 + $0x38] sm:$0xf]
    %v201 = vld [vmem:[%s3 + $0x3c] sm:$0xf]
    %v202 = vld [vmem:[%s4] sm:$0x1]
    %v204 = vperm.slane %v202, 0
    %v222 = vunpack.c.l.b16 %v186
    %v223 = vunpack.c.l.b16 %v187
    %v224 = vunpack.c.l.b16 %v188
    %v225 = vunpack.c.l.b16 %v189
    %v226 = vunpack.c.l.b16 %v190
    %v227 = vunpack.c.l.b16 %v191
    %v228 = vunpack.c.l.b16 %v192
    %v229 = vunpack.c.l.b16 %v193
    %v230 = vunpack.c.l.b16 %v194
    %v231 = vunpack.c.l.b16 %v195
    %v232 = vunpack.c.l.b16 %v196
    %v233 = vunpack.c.l.b16 %v197
    %v234 = vunpack.c.l.b16 %v198
    %v235 = vunpack.c.l.b16 %v199
    %v236 = vunpack.c.l.b16 %v200
    %v237 = vunpack.c.l.b16 %v201
    %v238 = vpack.c.b16 %v223, %v222
    %v239 = vpack.c.b16 %v225, %v224
    %v240 = vpack.c.b16 %v227, %v226
    %v241 = vpack.c.b16 %v229, %v228
    %v242 = vpack.c.b16 %v231, %v230
    %v243 = vpack.c.b16 %v233, %v232
    %v244 = vpack.c.b16 %v235, %v234
    %v245 = vpack.c.b16 %v237, %v236
    %254 = vmatpush.bf16.msra.mxu0 %v245
    %255 = vmatpush.bf16.msra.mxu0 %v244
    %256 = vmatpush.bf16.msra.mxu0 %v243
    %257 = vmatpush.bf16.msra.mxu0 %v242
    %258 = vmatpush.bf16.msra.mxu0 %v241
    %259 = vmatpush.bf16.msra.mxu0 %v240
    %260 = vmatpush.bf16.msra.mxu0 %v239
    %261 = vmatpush.bf16.msra.mxu0 %v238
    %262 = vmatmul.bf16.gmra.mxu0 %v178
    %v263 = vpop.f32.mrf.mxu0
    %v264 = vadd.f32 %v204, %v263
    %v265 = vpop.f32.mrf.mxu0
    %v266 = vadd.f32 %v204, %v265
    %267 = vmatmul.bf16.gmra.mxu0 %v179
    %v268 = vpop.f32.mrf.mxu0
    %v269 = vadd.f32 %v204, %v268
    %v270 = vpop.f32.mrf.mxu0
    %v271 = vadd.f32 %v204, %v270
    %272 = vmatmul.bf16.gmra.mxu0 %v180
    %v273 = vpop.f32.mrf.mxu0
    %v274 = vadd.f32 %v204, %v273
    %v275 = vpop.f32.mrf.mxu0
    %v276 = vadd.f32 %v204, %v275
    %277 = vmatmul.bf16.gmra.mxu0 %v181
    %v278 = vpop.f32.mrf.mxu0
    %v279 = vadd.f32 %v204, %v278
    %v280 = vpop.f32.mrf.mxu0
    %v281 = vadd.f32 %v204, %v280
    %282 = vmatmul.bf16.gmra.mxu0 %v182
    %v283 = vpop.f32.mrf.mxu0
    %v284 = vadd.f32 %v204, %v283
    %v285 = vpop.f32.mrf.mxu0
    %v286 = vadd.f32 %v204, %v285
    %287 = vmatmul.bf16.gmra.mxu0 %v183
    %v288 = vpop.f32.mrf.mxu0
    %v289 = vadd.f32 %v204, %v288
    %v290 = vpop.f32.mrf.mxu0
    %v291 = vadd.f32 %v204, %v290
    %292 = vmatmul.bf16.gmra.mxu0 %v184
    %v293 = vpop.f32.mrf.mxu0
    %v294 = vadd.f32 %v204, %v293
    %v295 = vpop.f32.mrf.mxu0
    %v296 = vadd.f32 %v204, %v295
    %297 = vmatmul.bf16.gmra.mxu0 %v185
    %v298 = vpop.f32.mrf.mxu0
    %v299 = vadd.f32 %v204, %v298
    %v300 = vpop.f32.mrf.mxu0
    %v301 = vadd.f32 %v204, %v300
    %302 = vdwg.mxu0
    %v303 = vmax.f32 %v264, 0.0
    %v304 = vmax.f32 %v266, 0.0
    %v305 = vmax.f32 %v269, 0.0
    %v306 = vmax.f32 %v271, 0.0
    %v307 = vmax.f32 %v274, 0.0
    %v308 = vmax.f32 %v276, 0.0
    %v309 = vmax.f32 %v279, 0.0
    %v310 = vmax.f32 %v281, 0.0
    %v311 = vmax.f32 %v284, 0.0
    %v312 = vmax.f32 %v286, 0.0
    %v313 = vmax.f32 %v289, 0.0
    %v314 = vmax.f32 %v291, 0.0
    %v315 = vmax.f32 %v294, 0.0
    %v316 = vmax.f32 %v296, 0.0
    %v317 = vmax.f32 %v299, 0.0
    %v318 = vmax.f32 %v301, 0.0
    %v319 = vpack.c.bf16 %v304, %v303
    %v320 = vpack.c.bf16 %v306, %v305
    %v321 = vpack.c.bf16 %v308, %v307
    %v322 = vpack.c.bf16 %v310, %v309
    %v323 = vpack.c.bf16 %v312, %v311
    %v324 = vpack.c.bf16 %v314, %v313
    %v325 = vpack.c.bf16 %v316, %v315
    %v326 = vpack.c.bf16 %v318, %v317
    %v327 = vld [vmem:[%s5] sm:$0xf]
    %v328 = vld [vmem:[%s5 + $0x4] sm:$0xf]
    %v329 = vld [vmem:[%s5 + $0x8] sm:$0xf]
    %v330 = vld [vmem:[%s5 + $0xc] sm:$0xf]
    %v331 = vld [vmem:[%s5 + $0x10] sm:$0xf]
    %v332 = vld [vmem:[%s5 + $0x14] sm:$0xf]
    %v333 = vld [vmem:[%s5 + $0x18] sm:$0xf]
    %v334 = vld [vmem:[%s5 + $0x1c] sm:$0xf]
    %v335 = vld [vmem:[%s5 + $0x20] sm:$0xf]
    %v336 = vld [vmem:[%s5 + $0x24] sm:$0xf]
    %v337 = vld [vmem:[%s5 + $0x28] sm:$0xf]
    %v338 = vld [vmem:[%s5 + $0x2c] sm:$0xf]
    %v339 = vld [vmem:[%s5 + $0x30] sm:$0xf]
    %v340 = vld [vmem:[%s5 + $0x34] sm:$0xf]
    %v341 = vld [vmem:[%s5 + $0x38] sm:$0xf]
    %v342 = vld [vmem:[%s5 + $0x3c] sm:$0xf]
    %v343 = vld [vmem:[%s6] sm:$0x1]
    %v345 = vperm.slane %v343, 0
    %v363 = vunpack.c.l.b16 %v327
    %v364 = vunpack.c.l.b16 %v328
    %v365 = vunpack.c.l.b16 %v329
    %v366 = vunpack.c.l.b16 %v330
    %v367 = vunpack.c.l.b16 %v331
    %v368 = vunpack.c.l.b16 %v332
    %v369 = vunpack.c.l.b16 %v333
    %v370 = vunpack.c.l.b16 %v334
    %v371 = vunpack.c.l.b16 %v335
    %v372 = vunpack.c.l.b16 %v336
    %v373 = vunpack.c.l.b16 %v337
    %v374 = vunpack.c.l.b16 %v338
    %v375 = vunpack.c.l.b16 %v339
    %v376 = vunpack.c.l.b16 %v340
    %v377 = vunpack.c.l.b16 %v341
    %v378 = vunpack.c.l.b16 %v342
    %v379 = vpack.c.b16 %v364, %v363
    %v380 = vpack.c.b16 %v366, %v365
    %v381 = vpack.c.b16 %v368, %v367
    %v382 = vpack.c.b16 %v370, %v369
    %v383 = vpack.c.b16 %v372, %v371
    %v384 = vpack.c.b16 %v374, %v373
    %v385 = vpack.c.b16 %v376, %v375
    %v386 = vpack.c.b16 %v378, %v377
    %395 = vmatpush.bf16.msra.mxu0 %v386
    %396 = vmatpush.bf16.msra.mxu0 %v385
    %397 = vmatpush.bf16.msra.mxu0 %v384
    %398 = vmatpush.bf16.msra.mxu0 %v383
    %399 = vmatpush.bf16.msra.mxu0 %v382
    %400 = vmatpush.bf16.msra.mxu0 %v381
    %401 = vmatpush.bf16.msra.mxu0 %v380
    %402 = vmatpush.bf16.msra.mxu0 %v379
    %403 = vmatmul.bf16.gmra.mxu0 %v319
    %v404 = vpop.f32.mrf.mxu0
    %v405 = vadd.f32 %v345, %v404
    %v406 = vpop.f32.mrf.mxu0
    %v407 = vadd.f32 %v345, %v406
    %408 = vmatmul.bf16.gmra.mxu0 %v320
    %v409 = vpop.f32.mrf.mxu0
    %v410 = vadd.f32 %v345, %v409
    %v411 = vpop.f32.mrf.mxu0
    %v412 = vadd.f32 %v345, %v411
    %413 = vmatmul.bf16.gmra.mxu0 %v321
    %v414 = vpop.f32.mrf.mxu0
    %v415 = vadd.f32 %v345, %v414
    %v416 = vpop.f32.mrf.mxu0
    %v417 = vadd.f32 %v345, %v416
    %418 = vmatmul.bf16.gmra.mxu0 %v322
    %v419 = vpop.f32.mrf.mxu0
    %v420 = vadd.f32 %v345, %v419
    %v421 = vpop.f32.mrf.mxu0
    %v422 = vadd.f32 %v345, %v421
    %423 = vmatmul.bf16.gmra.mxu0 %v323
    %v424 = vpop.f32.mrf.mxu0
    %v425 = vadd.f32 %v345, %v424
    %v426 = vpop.f32.mrf.mxu0
    %v427 = vadd.f32 %v345, %v426
    %428 = vmatmul.bf16.gmra.mxu0 %v324
    %v429 = vpop.f32.mrf.mxu0
    %v430 = vadd.f32 %v345, %v429
    %v431 = vpop.f32.mrf.mxu0
    %v432 = vadd.f32 %v345, %v431
    %433 = vmatmul.bf16.gmra.mxu0 %v325
    %v434 = vpop.f32.mrf.mxu0
    %v435 = vadd.f32 %v345, %v434
    %v436 = vpop.f32.mrf.mxu0
    %v437 = vadd.f32 %v345, %v436
    %438 = vmatmul.bf16.gmra.mxu0 %v326
    %v439 = vpop.f32.mrf.mxu0
    %v440 = vadd.f32 %v345, %v439
    %v441 = vpop.f32.mrf.mxu0
    %v442 = vadd.f32 %v345, %v441
    %443 = vdwg.mxu0
    %vm444 = vcmask 130048
    %445 = vst.msk [vmem:[#allocation5] sm:$0xff] %vm444, %v405
    %446 = vst.msk [vmem:[#allocation5 + $0x8] sm:$0xff] %vm444, %v407
    %447 = vst.msk [vmem:[#allocation5 + $0x10] sm:$0xff] %vm444, %v410
    %448 = vst.msk [vmem:[#allocation5 + $0x18] sm:$0xff] %vm444, %v412
    %449 = vst.msk [vmem:[#allocation5 + $0x20] sm:$0xff] %vm444, %v415
    %450 = vst.msk [vmem:[#allocation5 + $0x28] sm:$0xff] %vm444, %v417
    %451 = vst.msk [vmem:[#allocation5 + $0x30] sm:$0xff] %vm444, %v420
    %452 = vst.msk [vmem:[#allocation5 + $0x38] sm:$0xff] %vm444, %v422
    %453 = vst.msk [vmem:[#allocation5 + $0x40] sm:$0xff] %vm444, %v425
    %454 = vst.msk [vmem:[#allocation5 + $0x48] sm:$0xff] %vm444, %v427
    %455 = vst.msk [vmem:[#allocation5 + $0x50] sm:$0xff] %vm444, %v430
    %456 = vst.msk [vmem:[#allocation5 + $0x58] sm:$0xff] %vm444, %v432
    %457 = vst.msk [vmem:[#allocation5 + $0x60] sm:$0xff] %vm444, %v435
    %458 = vst.msk [vmem:[#allocation5 + $0x68] sm:$0xff] %vm444, %v437
    %459 = vst.msk [vmem:[#allocation5 + $0x70] sm:$0xff] %vm444, %v440
    %460 = vst.msk [vmem:[#allocation5 + $0x78] sm:$0xff] %vm444, %v442
    // Predicated region
    $region34: #{tpu_custom_call.1} parent=1 // pred_check
      _
    $region35: #{tpu_custom_call.1} parent=1 // pred_check_branch
      %462 = sbr.rel (0) target = $region37
    $region36: #{tpu_custom_call.1} parent=1 // pred_region
      %464 = vsyncadd [#allocation4], 1920
      %s465 = sshll.u32 [#allocation5], 4
      %s466 = int_to_ptr.vmem [resolvable:$true] %s465
      %s467 = sshll.u32 %s7, 4
      %s468 = int_to_ptr.hbm [resolvable:$true] %s467
      %473 = dma.vmem_to_hbm [thread:$0]  %s466, 128, %s468, [#allocation4], 128, 128, 8
    $region37: #{tpu_custom_call.1} parent=1 // pred_fallthru
      _
    // Predicated region
    $region38: #{tpu_custom_call.1} parent=1 // pred_check
      _
    $region39: #{tpu_custom_call.1} parent=1 // pred_check_branch
      %475 = sbr.rel (0) target = $region41
    $region40: #{tpu_custom_call.1} parent=1 // pred_region
      %477 = dma.done [#allocation4], 2048
    $region41: #{tpu_custom_call.1} parent=1 // pred_fallthru
      _
    %478 = vsyncpa [#allocation3], 1
    %479 = vsyncpa [#allocation4], 1

</llo_original>
